<compile_context>
chip_gen: v6e
topology: v6e:2x2x1
jax: 0.10.0
libtpu: 0.0.40
codegen_flags: <defaults>
</compile_context>

<pallas_src>
import functools

import jax
import jax.numpy as jnp
from jax.experimental import pallas as pl
from jax.experimental.pallas import tpu as pltpu


_NEG_SLOPE = 0.01  # PyTorch nn.LeakyReLU default negative_slope


def _leaky_relu(v):
    # For 0 < slope < 1, max(v, slope*v) == leaky_relu(v).
    return jnp.maximum(v, _NEG_SLOPE * v)


def _round_up(x, m):
    return ((x + m - 1) // m) * m


def mlp_kernel(x_ref,
               w1_ref, b1_ref,
               w2_ref, b2_ref,
               w3_ref, b3_ref,
               w4_ref, b4_ref,
               o_ref):
    # x_ref: [n_in, TILE_B] (batch on lanes); weights [out, in]; biases [out, 1].
    h = x_ref[...]
    h = _leaky_relu(
        jnp.dot(w1_ref[...], h, preferred_element_type=jnp.float32) + b1_ref[...])
    h = _leaky_relu(
        jnp.dot(w2_ref[...], h, preferred_element_type=jnp.float32) + b2_ref[...])
    h = _leaky_relu(
        jnp.dot(w3_ref[...], h, preferred_element_type=jnp.float32) + b3_ref[...])
    # The module applies an activation after every Linear, including the last;
    # Dropout(p=0) is the identity, so it is omitted.
    h = _leaky_relu(
        jnp.dot(w4_ref[...], h, preferred_element_type=jnp.float32) + b4_ref[...])
    o_ref[...] = h.astype(o_ref.dtype)


@functools.partial(jax.jit, static_argnames=("tile_b",))
def mlp_forward(x, params, *, tile_b=8192):
    """x: [B, n_in] float32. params: list of (W[out, in], b[out, 1]) per layer."""
    assert tile_b % 128 == 0, "tile_b must be a multiple of the 128-lane width"
    x = jnp.asarray(x, jnp.float32)
    B, n_in = x.shape
    n_out = params[-1][0].shape[0]

    # Put batch on the lane axis and pad it to a multiple of the tile.
    tb = min(tile_b, _round_up(B, 128))
    b_pad = _round_up(B, tb)
    x_t = jnp.transpose(x)                       # [n_in, B]
    if b_pad != B:
        x_t = jnp.pad(x_t, ((0, 0), (0, b_pad - B)))

    flat = []
    for w, b in params:
        flat.append(jnp.asarray(w, jnp.float32))
        flat.append(jnp.asarray(b, jnp.float32))

    def resident(a):
        # Full array, same block every grid step -> stays VMEM-resident.
        return pl.BlockSpec(a.shape, lambda i: (0, 0))

    out_t = pl.pallas_call(
        mlp_kernel,
        out_shape=jax.ShapeDtypeStruct((n_out, b_pad), jnp.float32),
        grid=(b_pad // tb,),
        in_specs=[pl.BlockSpec((n_in, tb), lambda i: (0, i))]
                 + [resident(a) for a in flat],
        out_specs=pl.BlockSpec((n_out, tb), lambda i: (0, i)),
        compiler_params=pltpu.CompilerParams(
            dimension_semantics=("parallel",),
            vmem_limit_bytes=32 * 1024 * 1024,
        ),
    )(x_t, *flat)

    return jnp.transpose(out_t[:, :B])           # [B, n_out]


def init_params(key, n_in, n_out, n_hidden=(16, 16, 16)):
    """Mimics torch.nn.Linear init (uniform +-1/sqrt(fan_in)).
    Weights stored [out, in] (native torch layout), biases [out, 1]."""
    dims = [n_in, *n_hidden, n_out]
    params = []
    for i in range(len(dims) - 1):
        fan_in, fan_out = dims[i], dims[i + 1]
        key, kw, kb = jax.random.split(key, 3)
        bound = 1.0 / jnp.sqrt(jnp.float32(fan_in))
        w = jax.random.uniform(kw, (fan_out, fan_in), jnp.float32, -bound, bound)
        b = jax.random.uniform(kb, (fan_out, 1), jnp.float32, -bound, bound)
        params.append((w, b))
    return params


def mlp_reference(x, params):
    """Pure-JAX reference (standard [B, features] orientation)."""
    h = jnp.asarray(x, jnp.float32)
    for w, b in params:
        h = jnp.dot(h, w.T) + b.T
        h = jnp.where(h >= 0, h, _NEG_SLOPE * h)
    return h


if __name__ == "__main__":
    key = jax.random.PRNGKey(0)
    n_in, n_out = 8, 4

    params = init_params(key, n_in, n_out)

    # Small-batch check (single grid step, batch padded to 128 lanes).
    key, kx = jax.random.split(key)
    x_small = jax.random.normal(kx, (2, n_in), jnp.float32)
    out_small = jax.block_until_ready(mlp_forward(x_small, params))
    ref_small = mlp_reference(x_small, params)
    assert out_small.shape == (2, n_out)
    assert jnp.allclose(out_small, ref_small, atol=1e-5, rtol=1e-5), \
        "small-batch mismatch vs reference"

    # Multi-tile check (exercises grid > 1 and batch padding).
    key, kx = jax.random.split(key)
    x_big = jax.random.normal(kx, (300, n_in), jnp.float32)
    out_big = jax.block_until_ready(mlp_forward(x_big, params, tile_b=128))
    ref_big = mlp_reference(x_big, params)
    assert out_big.shape == (300, n_out)
    assert jnp.allclose(out_big, ref_big, atol=1e-5, rtol=1e-5), \
        "multi-tile mismatch vs reference"

    print("KERNEL_OK")
</pallas_src>

<mosaic_0001>
module attributes {stable_mosaic.version = 11 : i64} {
  func.func @mlp_kernel(%arg0: i32, %arg1: memref<8x128xf32, #tpu.memory_space<vmem>>, %arg2: memref<16x8xf32, #tpu.memory_space<vmem>>, %arg3: memref<16x1xf32, #tpu.memory_space<vmem>>, %arg4: memref<16x16xf32, #tpu.memory_space<vmem>>, %arg5: memref<16x1xf32, #tpu.memory_space<vmem>>, %arg6: memref<16x16xf32, #tpu.memory_space<vmem>>, %arg7: memref<16x1xf32, #tpu.memory_space<vmem>>, %arg8: memref<4x16xf32, #tpu.memory_space<vmem>>, %arg9: memref<4x1xf32, #tpu.memory_space<vmem>>, %arg10: memref<4x128xf32, #tpu.memory_space<vmem>>) attributes {dimension_semantics = [#tpu.dimension_semantics<parallel>], iteration_bounds = array<i64: 1>, scalar_prefetch = 0 : i64, scratch_operands = 0 : i64, tpu.core_type = #tpu.core_type<tc>, window_params = [{transform_indices = @transform_0, window_bounds = array<i64: 8, 128>}, {pipeline_mode = #tpu.pipeline_mode<synchronous>, transform_indices = @transform_1, window_bounds = array<i64: 16, 8>}, {pipeline_mode = #tpu.pipeline_mode<synchronous>, transform_indices = @transform_2, window_bounds = array<i64: 16, 1>}, {pipeline_mode = #tpu.pipeline_mode<synchronous>, transform_indices = @transform_3, window_bounds = array<i64: 16, 16>}, {pipeline_mode = #tpu.pipeline_mode<synchronous>, transform_indices = @transform_4, window_bounds = array<i64: 16, 1>}, {pipeline_mode = #tpu.pipeline_mode<synchronous>, transform_indices = @transform_5, window_bounds = array<i64: 16, 16>}, {pipeline_mode = #tpu.pipeline_mode<synchronous>, transform_indices = @transform_6, window_bounds = array<i64: 16, 1>}, {pipeline_mode = #tpu.pipeline_mode<synchronous>, transform_indices = @transform_7, window_bounds = array<i64: 4, 16>}, {pipeline_mode = #tpu.pipeline_mode<synchronous>, transform_indices = @transform_8, window_bounds = array<i64: 4, 1>}, {transform_indices = @transform_9, window_bounds = array<i64: 4, 128>}]} {
    %c0 = arith.constant 0 : index
    %c0_0 = arith.constant 0 : index
    %0 = vector.load %arg1[%c0, %c0_0] : memref<8x128xf32, #tpu.memory_space<vmem>>, vector<8x128xf32>
    %c0_1 = arith.constant 0 : index
    %c0_2 = arith.constant 0 : index
    %1 = vector.load %arg2[%c0_1, %c0_2] : memref<16x8xf32, #tpu.memory_space<vmem>>, vector<16x8xf32>
    %cst = arith.constant dense<0.000000e+00> : vector<16x128xf32>
    %2 = tpu.matmul %1, %0, %cst {dimension_numbers = #tpu.dot_dimension_numbers<[1], [0], [0], [1], [0, 0, 1, 1], [], []>} : vector<16x8xf32>, vector<8x128xf32>, vector<16x128xf32> -> vector<16x128xf32>
    %c0_3 = arith.constant 0 : index
    %c0_4 = arith.constant 0 : index
    %3 = vector.load %arg3[%c0_3, %c0_4] : memref<16x1xf32, #tpu.memory_space<vmem>>, vector<16x1xf32>
    %4 = vector.broadcast %3 : vector<16x1xf32> to vector<16x128xf32>
    %5 = arith.addf %2, %4 : vector<16x128xf32>
    %cst_5 = arith.constant 0.00999999977 : f32
    %6 = vector.broadcast %cst_5 : f32 to vector<16x128xf32>
    %7 = arith.mulf %6, %5 : vector<16x128xf32>
    %8 = arith.maximumf %5, %7 : vector<16x128xf32>
    %c0_6 = arith.constant 0 : index
    %c0_7 = arith.constant 0 : index
    %9 = vector.load %arg4[%c0_6, %c0_7] : memref<16x16xf32, #tpu.memory_space<vmem>>, vector<16x16xf32>
    %cst_8 = arith.constant dense<0.000000e+00> : vector<16x128xf32>
    %10 = tpu.matmul %9, %8, %cst_8 {dimension_numbers = #tpu.dot_dimension_numbers<[1], [0], [0], [1], [0, 0, 1, 1], [], []>} : vector<16x16xf32>, vector<16x128xf32>, vector<16x128xf32> -> vector<16x128xf32>
    %c0_9 = arith.constant 0 : index
    %c0_10 = arith.constant 0 : index
    %11 = vector.load %arg5[%c0_9, %c0_10] : memref<16x1xf32, #tpu.memory_space<vmem>>, vector<16x1xf32>
    %12 = vector.broadcast %11 : vector<16x1xf32> to vector<16x128xf32>
    %13 = arith.addf %10, %12 : vector<16x128xf32>
    %cst_11 = arith.constant 0.00999999977 : f32
    %14 = vector.broadcast %cst_11 : f32 to vector<16x128xf32>
    %15 = arith.mulf %14, %13 : vector<16x128xf32>
    %16 = arith.maximumf %13, %15 : vector<16x128xf32>
    %c0_12 = arith.constant 0 : index
    %c0_13 = arith.constant 0 : index
    %17 = vector.load %arg6[%c0_12, %c0_13] : memref<16x16xf32, #tpu.memory_space<vmem>>, vector<16x16xf32>
    %cst_14 = arith.constant dense<0.000000e+00> : vector<16x128xf32>
    %18 = tpu.matmul %17, %16, %cst_14 {dimension_numbers = #tpu.dot_dimension_numbers<[1], [0], [0], [1], [0, 0, 1, 1], [], []>} : vector<16x16xf32>, vector<16x128xf32>, vector<16x128xf32> -> vector<16x128xf32>
    %c0_15 = arith.constant 0 : index
    %c0_16 = arith.constant 0 : index
    %19 = vector.load %arg7[%c0_15, %c0_16] : memref<16x1xf32, #tpu.memory_space<vmem>>, vector<16x1xf32>
    %20 = vector.broadcast %19 : vector<16x1xf32> to vector<16x128xf32>
    %21 = arith.addf %18, %20 : vector<16x128xf32>
    %cst_17 = arith.constant 0.00999999977 : f32
    %22 = vector.broadcast %cst_17 : f32 to vector<16x128xf32>
    %23 = arith.mulf %22, %21 : vector<16x128xf32>
    %24 = arith.maximumf %21, %23 : vector<16x128xf32>
    %c0_18 = arith.constant 0 : index
    %c0_19 = arith.constant 0 : index
    %25 = vector.load %arg8[%c0_18, %c0_19] : memref<4x16xf32, #tpu.memory_space<vmem>>, vector<4x16xf32>
    %cst_20 = arith.constant dense<0.000000e+00> : vector<4x128xf32>
    %26 = tpu.matmul %25, %24, %cst_20 {dimension_numbers = #tpu.dot_dimension_numbers<[1], [0], [0], [1], [0, 0, 1, 1], [], []>} : vector<4x16xf32>, vector<16x128xf32>, vector<4x128xf32> -> vector<4x128xf32>
    %c0_21 = arith.constant 0 : index
    %c0_22 = arith.constant 0 : index
    %27 = vector.load %arg9[%c0_21, %c0_22] : memref<4x1xf32, #tpu.memory_space<vmem>>, vector<4x1xf32>
    %28 = vector.broadcast %27 : vector<4x1xf32> to vector<4x128xf32>
    %29 = arith.addf %26, %28 : vector<4x128xf32>
    %cst_23 = arith.constant 0.00999999977 : f32
    %30 = vector.broadcast %cst_23 : f32 to vector<4x128xf32>
    %31 = arith.mulf %30, %29 : vector<4x128xf32>
    %32 = arith.maximumf %29, %31 : vector<4x128xf32>
    %c0_24 = arith.constant 0 : index
    %c0_25 = arith.constant 0 : index
    %33 = vector.load %arg10[%c0_24, %c0_25] : memref<4x128xf32, #tpu.memory_space<vmem>>, vector<4x128xf32>
    tpu.vector_store %arg10[%c0_24, %c0_25], %32 {strides = array<i32>} : memref<4x128xf32, #tpu.memory_space<vmem>>, vector<4x128xf32>,
    return
  }
  func.func @transform_0(%arg0: i32) -> (i32, i32) {
    %c0_i32 = arith.constant 0 : i32
    %c0_i32_0 = arith.constant 0 : i32
    return %c0_i32, %arg0 : i32, i32
  }
  func.func @transform_1(%arg0: i32) -> (i32, i32) {
    %c0_i32 = arith.constant 0 : i32
    %c0_i32_0 = arith.constant 0 : i32
    %c0_i32_1 = arith.constant 0 : i32
    return %c0_i32, %c0_i32_0 : i32, i32
  }
  func.func @transform_2(%arg0: i32) -> (i32, i32) {
    %c0_i32 = arith.constant 0 : i32
    %c0_i32_0 = arith.constant 0 : i32
    %c0_i32_1 = arith.constant 0 : i32
    return %c0_i32, %c0_i32_0 : i32, i32
  }
  func.func @transform_3(%arg0: i32) -> (i32, i32) {
    %c0_i32 = arith.constant 0 : i32
    %c0_i32_0 = arith.constant 0 : i32
    %c0_i32_1 = arith.constant 0 : i32
    return %c0_i32, %c0_i32_0 : i32, i32
  }
  func.func @transform_4(%arg0: i32) -> (i32, i32) {
    %c0_i32 = arith.constant 0 : i32
    %c0_i32_0 = arith.constant 0 : i32
    %c0_i32_1 = arith.constant 0 : i32
    return %c0_i32, %c0_i32_0 : i32, i32
  }
  func.func @transform_5(%arg0: i32) -> (i32, i32) {
    %c0_i32 = arith.constant 0 : i32
    %c0_i32_0 = arith.constant 0 : i32
    %c0_i32_1 = arith.constant 0 : i32
    return %c0_i32, %c0_i32_0 : i32, i32
  }
  func.func @transform_6(%arg0: i32) -> (i32, i32) {
    %c0_i32 = arith.constant 0 : i32
    %c0_i32_0 = arith.constant 0 : i32
    %c0_i32_1 = arith.constant 0 : i32
    return %c0_i32, %c0_i32_0 : i32, i32
  }
  func.func @transform_7(%arg0: i32) -> (i32, i32) {
    %c0_i32 = arith.constant 0 : i32
    %c0_i32_0 = arith.constant 0 : i32
    %c0_i32_1 = arith.constant 0 : i32
    return %c0_i32, %c0_i32_0 : i32, i32
  }
  func.func @transform_8(%arg0: i32) -> (i32, i32) {
    %c0_i32 = arith.constant 0 : i32
    %c0_i32_0 = arith.constant 0 : i32
    %c0_i32_1 = arith.constant 0 : i32
    return %c0_i32, %c0_i32_0 : i32, i32
  }
  func.func @transform_9(%arg0: i32) -> (i32, i32) {
    %c0_i32 = arith.constant 0 : i32
    %c0_i32_0 = arith.constant 0 : i32
    return %c0_i32, %arg0 : i32, i32
  }
}

</mosaic_0001>

<llo_original>
// kernel: mlp_forward.1
$region0: #{mlp_forward.1}
  #allocation0 [shape = 'u32[]', space=smem, size = 0x4, offset = 0x4, fixed_abs, tag = 'smem constant byte address 0x4 - core index']
  #allocation1 [shape = 'u32[144,128]{1,0:T(1,128)}', space=vmem, size = 0x12000, scoped, tag = 'internal scratch']
  %s0 = inlined_call_operand.vmem [shape: f32[8,128], index: 0, kind: input, shape index: {}]
  %s1 = inlined_call_operand.vmem [shape: f32[16,8], index: 1, kind: input, shape index: {}]
  %s2 = inlined_call_operand.vmem [shape: f32[16,1], index: 2, kind: input, shape index: {}]
  %s3 = inlined_call_operand.vmem [shape: f32[16,16], index: 3, kind: input, shape index: {}]
  %s4 = inlined_call_operand.vmem [shape: f32[16,1], index: 4, kind: input, shape index: {}]
  %s5 = inlined_call_operand.vmem [shape: f32[16,16], index: 5, kind: input, shape index: {}]
  %s6 = inlined_call_operand.vmem [shape: f32[16,1], index: 6, kind: input, shape index: {}]
  %s7 = inlined_call_operand.vmem [shape: f32[4,16], index: 7, kind: input, shape index: {}]
  %s8 = inlined_call_operand.vmem [shape: f32[4,1], index: 8, kind: input, shape index: {}]
  %s9 = inlined_call_operand.vmem [shape: f32[4,128], index: 9, kind: output, shape index: {}]
  %s10 = sld [smem:[#allocation0]]
  $region46: #{mlp_forward.1} parent=0
    _
  %s12 = ssub.s32 1, %s10
  %s13 = scalar_select 0, %s12, %s10
  // Predicated region
  $region2: #{mlp_forward.1} parent=0 // pred_check
    _
  $region3: #{mlp_forward.1} parent=0 // pred_check_branch
    %15 = sbr.rel (0) target = $region5
  $region4: #{mlp_forward.1} parent=0 // pred_region
    _
  $region5: #{mlp_forward.1} parent=0 // pred_fallthru
    _
  // Predicated region
  $region6: #{mlp_forward.1} parent=0 // pred_check
    _
  $region7: #{mlp_forward.1} parent=0 // pred_check_branch
    %17 = sbr.rel (0) target = $region9
  $region8: #{mlp_forward.1} parent=0 // pred_region
    _
  $region9: #{mlp_forward.1} parent=0 // pred_fallthru
    _
  // Predicated region
  $region10: #{mlp_forward.1} parent=0 // pred_check
    _
  $region11: #{mlp_forward.1} parent=0 // pred_check_branch
    %19 = sbr.rel (0) target = $region13
  $region12: #{mlp_forward.1} parent=0 // pred_region
    _
  $region13: #{mlp_forward.1} parent=0 // pred_fallthru
    _
  // Predicated region
  $region14: #{mlp_forward.1} parent=0 // pred_check
    _
  $region15: #{mlp_forward.1} parent=0 // pred_check_branch
    %21 = sbr.rel (0) target = $region17
  $region16: #{mlp_forward.1} parent=0 // pred_region
    _
  $region17: #{mlp_forward.1} parent=0 // pred_fallthru
    _
  // Predicated region
  $region18: #{mlp_forward.1} parent=0 // pred_check
    _
  $region19: #{mlp_forward.1} parent=0 // pred_check_branch
    %23 = sbr.rel (0) target = $region21
  $region20: #{mlp_forward.1} parent=0 // pred_region
    _
  $region21: #{mlp_forward.1} parent=0 // pred_fallthru
    _
  // Predicated region
  $region22: #{mlp_forward.1} parent=0 // pred_check
    _
  $region23: #{mlp_forward.1} parent=0 // pred_check_branch
    %25 = sbr.rel (0) target = $region25
  $region24: #{mlp_forward.1} parent=0 // pred_region
    _
  $region25: #{mlp_forward.1} parent=0 // pred_fallthru
    _
  // Predicated region
  $region26: #{mlp_forward.1} parent=0 // pred_check
    _
  $region27: #{mlp_forward.1} parent=0 // pred_check_branch
    %27 = sbr.rel (0) target = $region29
  $region28: #{mlp_forward.1} parent=0 // pred_region
    _
  $region29: #{mlp_forward.1} parent=0 // pred_fallthru
    _
  // Predicated region
  $region30: #{mlp_forward.1} parent=0 // pred_check
    _
  $region31: #{mlp_forward.1} parent=0 // pred_check_branch
    %29 = sbr.rel (0) target = $region33
  $region32: #{mlp_forward.1} parent=0 // pred_region
    _
  $region33: #{mlp_forward.1} parent=0 // pred_fallthru
    _
  // Predicated region
  $region34: #{mlp_forward.1} parent=0 // pred_check
    _
  $region35: #{mlp_forward.1} parent=0 // pred_check_branch
    %31 = sbr.rel (0) target = $region37
  $region36: #{mlp_forward.1} parent=0 // pred_region
    _
  $region37: #{mlp_forward.1} parent=0 // pred_fallthru
    _
  %v32 = vld [vmem:[%s0] sm:$0xff]
  %v33 = vld [vmem:[%s1] sm:$0xff]
  %v34 = vld [vmem:[%s1 + $0x8] sm:$0xff]
  %v35 = vld [vmem:[%s2] sm:$0xff]
  %v36 = vld [vmem:[%s2 + $0x8] sm:$0xff]
  %38 = vset.pattern.permute.xlu0 0
  %39 = vperm.xlu0 %38, %v35
  %v40 = vpop.permute.xlu0 %39
  %43 = vset.pattern.permute.xlu0 0
  %44 = vperm.xlu0 %43, %v36
  %v45 = vpop.permute.xlu0 %44
  %vm47 = vcmask 64512
  %v49 = vsel %vm47, %v33, 0
  %v52 = vsel %vm47, %v34, 0
  %54 = vmatprep.subr.mxu0 0.0
  %55 = vmatpush1.msra.mxu0 0.0
  %56 = vmatprep.subr.mxu0 0.0
  %57 = vmatpush1.msra.mxu0 0.0
  %58 = vmatprep.subr.mxu0 0.0
  %59 = vmatpush1.msra.mxu0 0.0
  %60 = vmatprep.subr.mxu0 0.0
  %61 = vmatpush1.msra.mxu0 0.0
  %62 = vmatprep.subr.mxu0 0.0
  %63 = vmatpush1.msra.mxu0 0.0
  %64 = vmatprep.subr.mxu0 0.0
  %65 = vmatpush1.msra.mxu0 0.0
  %66 = vmatprep.subr.mxu0 0.0
  %67 = vmatpush1.msra.mxu0 0.0
  %68 = vmatprep.subr.mxu0 0.0
  %69 = vmatpush1.msra.mxu0 0.0
  %70 = vmatprep.subr.mxu0 0.0
  %71 = vmatpush1.msra.mxu0 0.0
  %72 = vmatprep.subr.mxu0 0.0
  %73 = vmatpush1.msra.mxu0 0.0
  %74 = vmatprep.subr.mxu0 0.0
  %75 = vmatpush1.msra.mxu0 0.0
  %76 = vmatprep.subr.mxu0 0.0
  %77 = vmatpush1.msra.mxu0 0.0
  %78 = vmatprep.subr.mxu0 0.0
  %79 = vmatpush1.msra.mxu0 0.0
  %80 = vmatprep.subr.mxu0 0.0
  %81 = vmatpush1.msra.mxu0 0.0
  %82 = vmatprep.subr.mxu0 0.0
  %83 = vmatpush1.msra.mxu0 0.0
  %84 = vmatprep.subr.mxu0 0.0
  %85 = vmatpush1.msra.mxu0 %v32
  %86 = vmatprep.subr.mxu0 0.0
  %87 = vmatpush2.msra.mxu0 0.0
  %88 = vmatprep.subr.mxu0 0.0
  %89 = vmatpush2.msra.mxu0 0.0
  %90 = vmatprep.subr.mxu0 0.0
  %91 = vmatpush2.msra.mxu0 0.0
  %92 = vmatprep.subr.mxu0 0.0
  %93 = vmatpush2.msra.mxu0 0.0
  %94 = vmatprep.subr.mxu0 0.0
  %95 = vmatpush2.msra.mxu0 0.0
  %96 = vmatprep.subr.mxu0 0.0
  %97 = vmatpush2.msra.mxu0 0.0
  %98 = vmatprep.subr.mxu0 0.0
  %99 = vmatpush2.msra.mxu0 0.0
  %100 = vmatprep.subr.mxu0 0.0
  %101 = vmatpush2.msra.mxu0 0.0
  %102 = vmatprep.subr.mxu0 0.0
  %103 = vmatpush2.msra.mxu0 0.0
  %104 = vmatprep.subr.mxu0 0.0
  %105 = vmatpush2.msra.mxu0 0.0
  %106 = vmatprep.subr.mxu0 0.0
  %107 = vmatpush2.msra.mxu0 0.0
  %108 = vmatprep.subr.mxu0 0.0
  %109 = vmatpush2.msra.mxu0 0.0
  %110 = vmatprep.subr.mxu0 0.0
  %111 = vmatpush2.msra.mxu0 0.0
  %112 = vmatprep.subr.mxu0 0.0
  %113 = vmatpush2.msra.mxu0 0.0
  %114 = vmatprep.subr.mxu0 0.0
  %115 = vmatpush2.msra.mxu0 0.0
  %116 = vmatprep.subr.mxu0 0.0
  %117 = vmatpush2.msra.mxu0 0.0
  %118 = vmatprep.mubr.f32.mxu0 0.0
  %119 = vmatmul.mubr.f32.gmra.mxu0 %v49
  %v120 = vpop.f32.mrf.mxu0
  %v121 = vadd.f32 %v40, %v120
  %v122 = vpop.f32.mrf.mxu0
  %123 = vmatprep.mubr.f32.mxu0 0.0
  %124 = vmatmul.mubr.f32.gmra.mxu0 %v52
  %v125 = vpop.f32.mrf.mxu0
  %v126 = vadd.f32 %v45, %v125
  %v127 = vpop.f32.mrf.mxu0
  %128 = vdwg.mxu0
  %v129 = vmul.f32 %v121, 0.01
  %v130 = vmul.f32 %v126, 0.01
  %v131 = vmax.f32 %v121, %v129
  %v132 = vmax.f32 %v126, %v130
  %v133 = vld [vmem:[%s3] sm:$0xff]
  %v134 = vld [vmem:[%s3 + $0x8] sm:$0xff]
  %v135 = vld [vmem:[%s4] sm:$0xff]
  %v136 = vld [vmem:[%s4 + $0x8] sm:$0xff]
  %138 = vset.pattern.permute.xlu0 0
  %139 = vperm.xlu0 %138, %v135
  %v140 = vpop.permute.xlu0 %139
  %143 = vset.pattern.permute.xlu0 0
  %144 = vperm.xlu0 %143, %v136
  %v145 = vpop.permute.xlu0 %144
  %vm147 = vcmask 130048
  %v149 = vsel %vm147, %v133, 0
  %v152 = vsel %vm147, %v134, 0
  %154 = vmatprep.subr.mxu0 0.0
  %155 = vmatpush1.msra.mxu0 0.0
  %156 = vmatprep.subr.mxu0 0.0
  %157 = vmatpush1.msra.mxu0 0.0
  %158 = vmatprep.subr.mxu0 0.0
  %159 = vmatpush1.msra.mxu0 0.0
  %160 = vmatprep.subr.mxu0 0.0
  %161 = vmatpush1.msra.mxu0 0.0
  %162 = vmatprep.subr.mxu0 0.0
  %163 = vmatpush1.msra.mxu0 0.0
  %164 = vmatprep.subr.mxu0 0.0
  %165 = vmatpush1.msra.mxu0 0.0
  %166 = vmatprep.subr.mxu0 0.0
  %167 = vmatpush1.msra.mxu0 0.0
  %168 = vmatprep.subr.mxu0 0.0
  %169 = vmatpush1.msra.mxu0 0.0
  %170 = vmatprep.subr.mxu0 0.0
  %171 = vmatpush1.msra.mxu0 0.0
  %172 = vmatprep.subr.mxu0 0.0
  %173 = vmatpush1.msra.mxu0 0.0
  %174 = vmatprep.subr.mxu0 0.0
  %175 = vmatpush1.msra.mxu0 0.0
  %176 = vmatprep.subr.mxu0 0.0
  %177 = vmatpush1.msra.mxu0 0.0
  %178 = vmatprep.subr.mxu0 0.0
  %179 = vmatpush1.msra.mxu0 0.0
  %180 = vmatprep.subr.mxu0 0.0
  %181 = vmatpush1.msra.mxu0 0.0
  %182 = vmatprep.subr.mxu0 0.0
  %183 = vmatpush1.msra.mxu0 %v132
  %184 = vmatprep.subr.mxu0 0.0
  %185 = vmatpush1.msra.mxu0 %v131
  %186 = vmatprep.subr.mxu0 0.0
  %187 = vmatpush2.msra.mxu0 0.0
  %188 = vmatprep.subr.mxu0 0.0
  %189 = vmatpush2.msra.mxu0 0.0
  %190 = vmatprep.subr.mxu0 0.0
  %191 = vmatpush2.msra.mxu0 0.0
  %192 = vmatprep.subr.mxu0 0.0
  %193 = vmatpush2.msra.mxu0 0.0
  %194 = vmatprep.subr.mxu0 0.0
  %195 = vmatpush2.msra.mxu0 0.0
  %196 = vmatprep.subr.mxu0 0.0
  %197 = vmatpush2.msra.mxu0 0.0
  %198 = vmatprep.subr.mxu0 0.0
  %199 = vmatpush2.msra.mxu0 0.0
  %200 = vmatprep.subr.mxu0 0.0
  %201 = vmatpush2.msra.mxu0 0.0
  %202 = vmatprep.subr.mxu0 0.0
  %203 = vmatpush2.msra.mxu0 0.0
  %204 = vmatprep.subr.mxu0 0.0
  %205 = vmatpush2.msra.mxu0 0.0
  %206 = vmatprep.subr.mxu0 0.0
  %207 = vmatpush2.msra.mxu0 0.0
  %208 = vmatprep.subr.mxu0 0.0
  %209 = vmatpush2.msra.mxu0 0.0
  %210 = vmatprep.subr.mxu0 0.0
  %211 = vmatpush2.msra.mxu0 0.0
  %212 = vmatprep.subr.mxu0 0.0
  %213 = vmatpush2.msra.mxu0 0.0
  %214 = vmatprep.subr.mxu0 0.0
  %215 = vmatpush2.msra.mxu0 0.0
  %216 = vmatprep.subr.mxu0 0.0
  %217 = vmatpush2.msra.mxu0 0.0
  %218 = vmatprep.mubr.f32.mxu0 0.0
  %219 = vmatmul.mubr.f32.gmra.mxu0 %v149
  %v220 = vpop.f32.mrf.mxu0
  %v221 = vadd.f32 %v140, %v220
  %v222 = vpop.f32.mrf.mxu0
  %223 = vmatprep.mubr.f32.mxu0 0.0
  %224 = vmatmul.mubr.f32.gmra.mxu0 %v152
  %v225 = vpop.f32.mrf.mxu0
  %v226 = vadd.f32 %v145, %v225
  %v227 = vpop.f32.mrf.mxu0
  %228 = vdwg.mxu0
  %v229 = vmul.f32 %v221, 0.01
  %v230 = vmul.f32 %v226, 0.01
  %v231 = vmax.f32 %v221, %v229
  %v232 = vmax.f32 %v226, %v230
  %v233 = vld [vmem:[%s5] sm:$0xff]
  %v234 = vld [vmem:[%s5 + $0x8] sm:$0xff]
  %v235 = vld [vmem:[%s6] sm:$0xff]
  %v236 = vld [vmem:[%s6 + $0x8] sm:$0xff]
  %238 = vset.pattern.permute.xlu0 0
  %239 = vperm.xlu0 %238, %v235
  %v240 = vpop.permute.xlu0 %239
  %243 = vset.pattern.permute.xlu0 0
  %244 = vperm.xlu0 %243, %v236
  %v245 = vpop.permute.xlu0 %244
  %v248 = vsel %vm147, %v233, 0
  %v251 = vsel %vm147, %v234, 0
  %253 = vmatprep.subr.mxu0 0.0
  %254 = vmatpush1.msra.mxu0 0.0
  %255 = vmatprep.subr.mxu0 0.0
  %256 = vmatpush1.msra.mxu0 0.0
  %257 = vmatprep.subr.mxu0 0.0
  %258 = vmatpush1.msra.mxu0 0.0
  %259 = vmatprep.subr.mxu0 0.0
  %260 = vmatpush1.msra.mxu0 0.0
  %261 = vmatprep.subr.mxu0 0.0
  %262 = vmatpush1.msra.mxu0 0.0
  %263 = vmatprep.subr.mxu0 0.0
  %264 = vmatpush1.msra.mxu0 0.0
  %265 = vmatprep.subr.mxu0 0.0
  %266 = vmatpush1.msra.mxu0 0.0
  %267 = vmatprep.subr.mxu0 0.0
  %268 = vmatpush1.msra.mxu0 0.0
  %269 = vmatprep.subr.mxu0 0.0
  %270 = vmatpush1.msra.mxu0 0.0
  %271 = vmatprep.subr.mxu0 0.0
  %272 = vmatpush1.msra.mxu0 0.0
  %273 = vmatprep.subr.mxu0 0.0
  %274 = vmatpush1.msra.mxu0 0.0
  %275 = vmatprep.subr.mxu0 0.0
  %276 = vmatpush1.msra.mxu0 0.0
  %277 = vmatprep.subr.mxu0 0.0
  %278 = vmatpush1.msra.mxu0 0.0
  %279 = vmatprep.subr.mxu0 0.0
  %280 = vmatpush1.msra.mxu0 0.0
  %281 = vmatprep.subr.mxu0 0.0
  %282 = vmatpush1.msra.mxu0 %v232
  %283 = vmatprep.subr.mxu0 0.0
  %284 = vmatpush1.msra.mxu0 %v231
  %285 = vmatprep.subr.mxu0 0.0
  %286 = vmatpush2.msra.mxu0 0.0
  %287 = vmatprep.subr.mxu0 0.0
  %288 = vmatpush2.msra.mxu0 0.0
  %289 = vmatprep.subr.mxu0 0.0
  %290 = vmatpush2.msra.mxu0 0.0
  %291 = vmatprep.subr.mxu0 0.0
  %292 = vmatpush2.msra.mxu0 0.0
  %293 = vmatprep.subr.mxu0 0.0
  %294 = vmatpush2.msra.mxu0 0.0
  %295 = vmatprep.subr.mxu0 0.0
  %296 = vmatpush2.msra.mxu0 0.0
  %297 = vmatprep.subr.mxu0 0.0
  %298 = vmatpush2.msra.mxu0 0.0
  %299 = vmatprep.subr.mxu0 0.0
  %300 = vmatpush2.msra.mxu0 0.0
  %301 = vmatprep.subr.mxu0 0.0
  %302 = vmatpush2.msra.mxu0 0.0
  %303 = vmatprep.subr.mxu0 0.0
  %304 = vmatpush2.msra.mxu0 0.0
  %305 = vmatprep.subr.mxu0 0.0
  %306 = vmatpush2.msra.mxu0 0.0
  %307 = vmatprep.subr.mxu0 0.0
  %308 = vmatpush2.msra.mxu0 0.0
  %309 = vmatprep.subr.mxu0 0.0
  %310 = vmatpush2.msra.mxu0 0.0
  %311 = vmatprep.subr.mxu0 0.0
  %312 = vmatpush2.msra.mxu0 0.0
  %313 = vmatprep.subr.mxu0 0.0
  %314 = vmatpush2.msra.mxu0 0.0
  %315 = vmatprep.subr.mxu0 0.0
  %316 = vmatpush2.msra.mxu0 0.0
  %317 = vmatprep.mubr.f32.mxu0 0.0
  %318 = vmatmul.mubr.f32.gmra.mxu0 %v248
  %v319 = vpop.f32.mrf.mxu0
  %v320 = vadd.f32 %v240, %v319
  %v321 = vpop.f32.mrf.mxu0
  %322 = vmatprep.mubr.f32.mxu0 0.0
  %323 = vmatmul.mubr.f32.gmra.mxu0 %v251
  %v324 = vpop.f32.mrf.mxu0
  %v325 = vadd.f32 %v245, %v324
  %v326 = vpop.f32.mrf.mxu0
  %327 = vdwg.mxu0
  %v328 = vmul.f32 %v320, 0.01
  %v329 = vmul.f32 %v325, 0.01
  %v330 = vmax.f32 %v320, %v328
  %v331 = vmax.f32 %v325, %v329
  %v332 = vld [vmem:[%s7] sm:$0xf]
  %v333 = vld [vmem:[%s8] sm:$0xf]
  %335 = vset.pattern.permute.xlu0 0
  %336 = vperm.xlu0 %335, %v333
  %v337 = vpop.permute.xlu0 %336
  %v340 = vsel %vm147, %v332, 0
  %342 = vmatprep.subr.mxu0 0.0
  %343 = vmatpush1.msra.mxu0 0.0
  %344 = vmatprep.subr.mxu0 0.0
  %345 = vmatpush1.msra.mxu0 0.0
  %346 = vmatprep.subr.mxu0 0.0
  %347 = vmatpush1.msra.mxu0 0.0
  %348 = vmatprep.subr.mxu0 0.0
  %349 = vmatpush1.msra.mxu0 0.0
  %350 = vmatprep.subr.mxu0 0.0
  %351 = vmatpush1.msra.mxu0 0.0
  %352 = vmatprep.subr.mxu0 0.0
  %353 = vmatpush1.msra.mxu0 0.0
  %354 = vmatprep.subr.mxu0 0.0
  %355 = vmatpush1.msra.mxu0 0.0
  %356 = vmatprep.subr.mxu0 0.0
  %357 = vmatpush1.msra.mxu0 0.0
  %358 = vmatprep.subr.mxu0 0.0
  %359 = vmatpush1.msra.mxu0 0.0
  %360 = vmatprep.subr.mxu0 0.0
  %361 = vmatpush1.msra.mxu0 0.0
  %362 = vmatprep.subr.mxu0 0.0
  %363 = vmatpush1.msra.mxu0 0.0
  %364 = vmatprep.subr.mxu0 0.0
  %365 = vmatpush1.msra.mxu0 0.0
  %366 = vmatprep.subr.mxu0 0.0
  %367 = vmatpush1.msra.mxu0 0.0
  %368 = vmatprep.subr.mxu0 0.0
  %369 = vmatpush1.msra.mxu0 0.0
  %370 = vmatprep.subr.mxu0 0.0
  %371 = vmatpush1.msra.mxu0 %v331
  %372 = vmatprep.subr.mxu0 0.0
  %373 = vmatpush1.msra.mxu0 %v330
  %374 = vmatprep.subr.mxu0 0.0
  %375 = vmatpush2.msra.mxu0 0.0
  %376 = vmatprep.subr.mxu0 0.0
  %377 = vmatpush2.msra.mxu0 0.0
  %378 = vmatprep.subr.mxu0 0.0
  %379 = vmatpush2.msra.mxu0 0.0
  %380 = vmatprep.subr.mxu0 0.0
  %381 = vmatpush2.msra.mxu0 0.0
  %382 = vmatprep.subr.mxu0 0.0
  %383 = vmatpush2.msra.mxu0 0.0
  %384 = vmatprep.subr.mxu0 0.0
  %385 = vmatpush2.msra.mxu0 0.0
  %386 = vmatprep.subr.mxu0 0.0
  %387 = vmatpush2.msra.mxu0 0.0
  %388 = vmatprep.subr.mxu0 0.0
  %389 = vmatpush2.msra.mxu0 0.0
  %390 = vmatprep.subr.mxu0 0.0
  %391 = vmatpush2.msra.mxu0 0.0
  %392 = vmatprep.subr.mxu0 0.0
  %393 = vmatpush2.msra.mxu0 0.0
  %394 = vmatprep.subr.mxu0 0.0
  %395 = vmatpush2.msra.mxu0 0.0
  %396 = vmatprep.subr.mxu0 0.0
  %397 = vmatpush2.msra.mxu0 0.0
  %398 = vmatprep.subr.mxu0 0.0
  %399 = vmatpush2.msra.mxu0 0.0
  %400 = vmatprep.subr.mxu0 0.0
  %401 = vmatpush2.msra.mxu0 0.0
  %402 = vmatprep.subr.mxu0 0.0
  %403 = vmatpush2.msra.mxu0 0.0
  %404 = vmatprep.subr.mxu0 0.0
  %405 = vmatpush2.msra.mxu0 0.0
  %406 = vmatprep.mubr.f32.mxu0 0.0
  %407 = vmatmul.mubr.f32.gmra.mxu0 %v340
  %v408 = vpop.f32.mrf.mxu0
  %v409 = vadd.f32 %v337, %v408
  %v410 = vpop.f32.mrf.mxu0
  %411 = vdwg.mxu0
  %v412 = vmul.f32 %v409, 0.01
  %v413 = vmax.f32 %v409, %v412
  %414 = vst [vmem:[%s9] sm:$0xf] %v413
  // Predicated region
  $region38: #{mlp_forward.1} parent=0 // pred_check
    _
  $region39: #{mlp_forward.1} parent=0 // pred_check_branch
    %416 = sbr.rel (0) target = $region41
  $region40: #{mlp_forward.1} parent=0 // pred_region
    _
  $region41: #{mlp_forward.1} parent=0 // pred_fallthru
    _
  // Predicated region
  $region42: #{mlp_forward.1} parent=0 // pred_check
    _
  $region43: #{mlp_forward.1} parent=0 // pred_check_branch
    %418 = sbr.rel (0) target = $region45
  $region44: #{mlp_forward.1} parent=0 // pred_region
    _
  $region45: #{mlp_forward.1} parent=0 // pred_fallthru
    _

</llo_original>
